<compile_context>
chip_gen: v7x
topology: tpu7x:2x2x1
jax: 0.10.0
libtpu: 0.0.40
codegen_flags: <defaults>
</compile_context>

<pallas_src>
import functools

import jax
import jax.numpy as jnp
from jax import lax
from jax.experimental import pallas as pl
from jax.experimental.pallas import tpu as pltpu


def _round_up(v, m):
    return (v + m - 1) // m * m


def _tpu_vmem_bytes():
    """VMEM capacity; conservative 64 MiB (v7x per-TC) if query fails."""
    try:
        cap = int(pltpu.get_tpu_info().vmem_capacity_bytes)
        if cap > 0:
            return cap
    except Exception:
        pass
    return 64 * 1024 * 1024


def _select_tiles(H, I, x_itemsize, w_itemsize, vmem_cap):
    """Pick (tm_target, ti, vmem_limit) from a per-generation VMEM budget.

    Budget accounts for double-buffered x/out/weight blocks, the fp32
    accumulator, and the per-step fp32 temporaries (gu, silu temp, h cast).
    """
    if vmem_cap >= 96 * 1024 * 1024:          # v5e / v6e: 128 MiB VMEM
        vmem_limit = 100 * 1024 * 1024
        tm_target = 768
    else:                                      # v7x (64 MiB per TC) / unknown
        vmem_limit = 56 * 1024 * 1024
        tm_target = 512

    guard = 8 * 1024 * 1024                    # compiler temporaries headroom
    budget = vmem_limit - guard
    i_cap = max(128, min(_round_up(I, 128), 2048))

    while True:
        # x (2 bufs) + out (2 bufs) + fp32 accumulator scratch
        fixed = 4 * tm_target * H * x_itemsize + 4 * tm_target * H
        # per unit of ti: wgu+wd blocks (2 bufs each, 3*ti*H weights total)
        # + gu fp32 (8*tm) + silu temp fp32 (4*tm) + h cast (x_itemsize*tm)
        per_ti = 6 * H * w_itemsize + tm_target * (12 + x_itemsize)
        avail = budget - fixed
        ti = (avail // per_ti) // 128 * 128 if avail > 0 else 0
        if ti >= 128 or tm_target <= 128:
            break
        tm_target //= 2

    ti = int(max(128, min(ti, i_cap)))
    return int(tm_target), ti, int(vmem_limit)


def prepare_pruned_mlp_weights(gate_w, up_w, down_w, x_dtype):
    """One-time (model-load) weight preparation. NOT in the per-call hot path.

    gate_w, up_w: [I, H]  (nn.Linear layout [out_features, in_features])
    down_w:       [H, I]

    Returns:
      wgu : [2*Ip, H]  gate/up fused, tile-interleaved per ti block
      wd_t: [Ip, H]    down_proj weight transposed (contiguous row tiles)
      params: dict(ti, tm_target, vmem_limit_bytes)
    """
    I, H = gate_w.shape
    assert up_w.shape == (I, H) and down_w.shape == (H, I)

    x_itemsize = jnp.dtype(x_dtype).itemsize
    w_itemsize = jnp.dtype(gate_w.dtype).itemsize
    vmem_cap = _tpu_vmem_bytes()
    tm_target, ti, vmem_limit = _select_tiles(H, I, x_itemsize, w_itemsize, vmem_cap)

    Ip = _round_up(I, ti)
    pad_i = Ip - I
    # Zero-padded intermediate channels contribute exactly 0 to the output.
    gate_p = jnp.pad(gate_w, ((0, pad_i), (0, 0))) if pad_i else gate_w
    up_p = jnp.pad(up_w, ((0, pad_i), (0, 0))) if pad_i else up_w
    wd_t = down_w.T
    wd_t = jnp.pad(wd_t, ((0, pad_i), (0, 0))) if pad_i else jnp.asarray(wd_t)

    nblk = Ip // ti
    # Tile-interleave so block k is the contiguous rows [k*2*ti : (k+1)*2*ti]:
    #   rows [0:ti] of the block = gate tile k, rows [ti:2*ti] = up tile k.
    wgu = jnp.concatenate(
        [gate_p.reshape(nblk, ti, H), up_p.reshape(nblk, ti, H)], axis=1
    ).reshape(2 * Ip, H)

    params = dict(ti=ti, tm_target=tm_target, vmem_limit_bytes=vmem_limit)
    return wgu, wd_t, params


def _mlp_kernel(x_ref, wgu_ref, wd_ref, o_ref, acc_ref, *, ti):
    # x_ref:   (tm, H)      token tile (input dtype, e.g. bf16/f32)
    # wgu_ref: (2*ti, H)    fused gate/up weight tile ([out, in] layout)
    # wd_ref:  (ti, H)      down_proj weight tile, pre-transposed ([in, out])
    # o_ref:   (tm, H)      output tile
    # acc_ref: (tm, H)      fp32 accumulator, resident across the I axis
    k = pl.program_id(1)

    @pl.when(k == 0)
    def _():
        acc_ref[...] = jnp.zeros_like(acc_ref)

    x = x_ref[...]
    # gate+up in one MXU call: contract in_features of both operands.
    dn_t = (((1,), (1,)), ((), ()))
    gu = lax.dot_general(x, wgu_ref[...], dn_t,
                         preferred_element_type=jnp.float32)   # (tm, 2*ti)
    g = gu[:, :ti]                                              # lane-aligned splits
    u = gu[:, ti:]

    h = (g * jax.nn.sigmoid(g)) * u          # SiLU(g) * u, fp32
    h = h.astype(x.dtype)                    # back to input dtype for the MXU

    # Standard [M,K]x[K,N] down_proj partial for this intermediate slice.
    acc_ref[...] += jnp.dot(h, wd_ref[...], preferred_element_type=jnp.float32)

    @pl.when(k == pl.num_programs(1) - 1)
    def _():
        o_ref[...] = acc_ref[...].astype(o_ref.dtype)


@functools.partial(jax.jit, static_argnames=("ti", "tm_target", "vmem_limit_bytes"))
def pruned_qwen2_mlp_forward(x, wgu, wd_t, *, ti, tm_target, vmem_limit_bytes):
    """Forward pass. x: [B, S, H]; wgu/wd_t from prepare_pruned_mlp_weights."""
    B, S, H = x.shape
    M = B * S
    Ip = wd_t.shape[0]
    assert wgu.shape == (2 * Ip, H) and Ip % ti == 0

    # Token tile: as large as the budget allows (weights are re-streamed once
    # per token tile, so arithmetic intensity ~ tm FLOPs/byte).
    tm = _round_up(M, 8) if M <= tm_target else tm_target
    Mp = _round_up(M, tm)

    x2d = x.reshape(M, H)
    if Mp != M:
        x2d = jnp.pad(x2d, ((0, Mp - M), (0, 0)))   # cheap activation pad only

    grid = (Mp // tm, Ip // ti)   # token axis parallel, I axis = reduction

    x_itemsize = jnp.dtype(x.dtype).itemsize
    w_itemsize = jnp.dtype(wgu.dtype).itemsize
    cost = pl.CostEstimate(
        flops=int(6 * M * Ip * H),
        transcendentals=int(M * Ip),
        bytes_accessed=int(3 * Ip * H * w_itemsize * (Mp // tm)
                           + 2 * M * H * x_itemsize),
    )

    out2d = pl.pallas_call(
        functools.partial(_mlp_kernel, ti=ti),
        out_shape=jax.ShapeDtypeStruct((Mp, H), x.dtype),
        grid_spec=pltpu.PrefetchScalarGridSpec(
            num_scalar_prefetch=0,
            grid=grid,
            in_specs=[
                pl.BlockSpec((tm, H), lambda i, k: (i, 0)),       # x tokens
                pl.BlockSpec((2 * ti, H), lambda i, k: (k, 0)),   # fused gate+up tile
                pl.BlockSpec((ti, H), lambda i, k: (k, 0)),       # down_proj^T tile
            ],
            out_specs=pl.BlockSpec((tm, H), lambda i, k: (i, 0)),
            scratch_shapes=[pltpu.VMEM((tm, H), jnp.float32)],
        ),
        compiler_params=pltpu.CompilerParams(
            dimension_semantics=("parallel", "arbitrary"),
            vmem_limit_bytes=vmem_limit_bytes,
        ),
        cost_estimate=cost,
    )(x2d, wgu, wd_t)

    if Mp != M:
        out2d = out2d[:M]
    return out2d.reshape(B, S, H)


class PrunedQwen2MLPPallas:
    """Module-like wrapper: weight prep happens once at construction."""

    def __init__(self, gate_w, up_w, down_w, x_dtype=jnp.bfloat16):
        self.wgu, self.wd_t, self.params = prepare_pruned_mlp_weights(
            gate_w, up_w, down_w, x_dtype)

    def __call__(self, x):
        p = self.params
        return pruned_qwen2_mlp_forward(
            x, self.wgu, self.wd_t,
            ti=p["ti"], tm_target=p["tm_target"],
            vmem_limit_bytes=p["vmem_limit_bytes"])


def _reference(x, gate_w, up_w, down_w):
    g = jnp.einsum("bsh,ih->bsi", x, gate_w)
    u = jnp.einsum("bsh,ih->bsi", x, up_w)
    h = (g * jax.nn.sigmoid(g)) * u
    return jnp.einsum("bsi,hi->bsh", h, down_w)


if __name__ == "__main__":
    key = jax.random.PRNGKey(0)

    # Synthetic config: hidden_size=32, original intermediate=64,
    # mask_mlp keeps 48 channels -> pruned intermediate_size=48.
    batch, seq, hidden = 2, 8, 32
    orig_intermediate = 64
    mask_mlp = (jnp.arange(orig_intermediate) % 4 != 3)   # deterministic mask
    intermediate = int(mask_mlp.sum())                    # 48

    kx, kg, ku, kd = jax.random.split(key, 4)
    x = jax.random.normal(kx, (batch, seq, hidden), dtype=jnp.float32)
    # nn.Linear weight layout: [out_features, in_features]
    gate_w = jax.random.normal(kg, (intermediate, hidden), dtype=jnp.float32) * 0.05
    up_w = jax.random.normal(ku, (intermediate, hidden), dtype=jnp.float32) * 0.05
    down_w = jax.random.normal(kd, (hidden, intermediate), dtype=jnp.float32) * 0.05

    mlp = PrunedQwen2MLPPallas(gate_w, up_w, down_w, x_dtype=x.dtype)
    out = jax.block_until_ready(mlp(x))

    ref = _reference(x, gate_w, up_w, down_w)
    assert out.shape == (batch, seq, hidden)
    # fp32 everywhere here; for bf16 inputs expect ~1e-2 tolerances (h is cast
    # back to the input dtype before down_proj, as in standard bf16 MLPs).
    err = jnp.max(jnp.abs(out - ref))
    assert jnp.allclose(out, ref, atol=2e-4, rtol=2e-4), f"mismatch vs reference: {err}"

    print("KERNEL_OK")
</pallas_src>

<mosaic_0001>
module attributes {stable_mosaic.version = 11 : i64} {
  func.func @_mlp_kernel(%arg0: i32, %arg1: i32, %arg2: memref<16x32xf32, #tpu.memory_space<vmem>>, %arg3: memref<256x32xf32, #tpu.memory_space<vmem>>, %arg4: memref<128x32xf32, #tpu.memory_space<vmem>>, %arg5: memref<16x32xf32, #tpu.memory_space<vmem>>, %arg6: memref<16x32xf32, #tpu.memory_space<vmem>>) attributes {dimension_semantics = [#tpu.dimension_semantics<parallel>, #tpu.dimension_semantics<arbitrary>], iteration_bounds = array<i64: 1, 1>, scalar_prefetch = 0 : i64, scratch_operands = 1 : i64, tpu.core_type = #tpu.core_type<tc>, window_params = [{transform_indices = @transform_0, window_bounds = array<i64: 16, 32>}, {transform_indices = @transform_1, window_bounds = array<i64: 256, 32>}, {transform_indices = @transform_2, window_bounds = array<i64: 128, 32>}, {transform_indices = @transform_3, window_bounds = array<i64: 16, 32>}]} {
    %c0_i32 = arith.constant 0 : i32
    %0 = arith.cmpi eq, %arg1, %c0_i32 : i32
    %1 = arith.extui %0 : i1 to i32
    %c0_i32_0 = arith.constant 0 : i32
    %2 = arith.cmpi ne, %1, %c0_i32_0 : i32
    scf.if %2 {
      %cst_14 = arith.constant 0.000000e+00 : f32
      %23 = vector.broadcast %cst_14 : f32 to vector<16x32xf32>
      %c0_15 = arith.constant 0 : index
      %c0_16 = arith.constant 0 : index
      %24 = vector.load %arg6[%c0_15, %c0_16] : memref<16x32xf32, #tpu.memory_space<vmem>>, vector<16x32xf32>
      tpu.vector_store %arg6[%c0_15, %c0_16], %23 {strides = array<i32>} : memref<16x32xf32, #tpu.memory_space<vmem>>, vector<16x32xf32>,
    } else {
    }
    %c0 = arith.constant 0 : index
    %c0_1 = arith.constant 0 : index
    %3 = vector.load %arg2[%c0, %c0_1] : memref<16x32xf32, #tpu.memory_space<vmem>>, vector<16x32xf32>
    %c0_2 = arith.constant 0 : index
    %c0_3 = arith.constant 0 : index
    %4 = vector.load %arg3[%c0_2, %c0_3] : memref<256x32xf32, #tpu.memory_space<vmem>>, vector<256x32xf32>
    %cst = arith.constant dense<0.000000e+00> : vector<16x256xf32>
    %5 = tpu.matmul %3, %4, %cst {dimension_numbers = #tpu.dot_dimension_numbers<[1], [1], [0], [0], [0, 0, 1, 0], [], []>} : vector<16x32xf32>, vector<256x32xf32>, vector<16x256xf32> -> vector<16x256xf32>
    %6 = vector.extract_strided_slice %5 {offsets = [0, 0], sizes = [16, 128], strides = [1, 1]} : vector<16x256xf32> to vector<16x128xf32>
    %7 = vector.extract_strided_slice %5 {offsets = [0, 128], sizes = [16, 128], strides = [1, 1]} : vector<16x256xf32> to vector<16x128xf32>
    %8 = arith.negf %6 : vector<16x128xf32>
    %9 = math.exp %8 : vector<16x128xf32>
    %cst_4 = arith.constant 1.000000e+00 : f32
    %10 = vector.broadcast %cst_4 : f32 to vector<16x128xf32>
    %11 = arith.addf %10, %9 : vector<16x128xf32>
    %12 = arith.divf %10, %11 : vector<16x128xf32>
    %13 = arith.mulf %6, %12 : vector<16x128xf32>
    %14 = arith.mulf %13, %7 : vector<16x128xf32>
    %c0_5 = arith.constant 0 : index
    %c0_6 = arith.constant 0 : index
    %15 = vector.load %arg6[%c0_5, %c0_6] : memref<16x32xf32, #tpu.memory_space<vmem>>, vector<16x32xf32>
    %c0_7 = arith.constant 0 : index
    %c0_8 = arith.constant 0 : index
    %16 = vector.load %arg4[%c0_7, %c0_8] : memref<128x32xf32, #tpu.memory_space<vmem>>, vector<128x32xf32>
    %cst_9 = arith.constant dense<0.000000e+00> : vector<16x32xf32>
    %17 = tpu.matmul %14, %16, %cst_9 {dimension_numbers = #tpu.dot_dimension_numbers<[1], [0], [0], [1], [0, 0, 1, 1], [], []>} : vector<16x128xf32>, vector<128x32xf32>, vector<16x32xf32> -> vector<16x32xf32>
    %18 = arith.addf %15, %17 : vector<16x32xf32>
    %c0_10 = arith.constant 0 : index
    %c0_11 = arith.constant 0 : index
    %19 = vector.load %arg6[%c0_10, %c0_11] : memref<16x32xf32, #tpu.memory_space<vmem>>, vector<16x32xf32>
    tpu.vector_store %arg6[%c0_10, %c0_11], %18 {strides = array<i32>} : memref<16x32xf32, #tpu.memory_space<vmem>>, vector<16x32xf32>,
    %c0_i32_12 = arith.constant 0 : i32
    %20 = arith.cmpi eq, %arg1, %c0_i32_12 : i32
    %21 = arith.extui %20 : i1 to i32
    %c0_i32_13 = arith.constant 0 : i32
    %22 = arith.cmpi ne, %21, %c0_i32_13 : i32
    scf.if %22 {
      %c0_14 = arith.constant 0 : index
      %c0_15 = arith.constant 0 : index
      %23 = vector.load %arg6[%c0_14, %c0_15] : memref<16x32xf32, #tpu.memory_space<vmem>>, vector<16x32xf32>
      %c0_16 = arith.constant 0 : index
      %c0_17 = arith.constant 0 : index
      %24 = vector.load %arg5[%c0_16, %c0_17] : memref<16x32xf32, #tpu.memory_space<vmem>>, vector<16x32xf32>
      tpu.vector_store %arg5[%c0_16, %c0_17], %23 {strides = array<i32>} : memref<16x32xf32, #tpu.memory_space<vmem>>, vector<16x32xf32>,
    } else {
    }
    return
  }
  func.func @transform_0(%arg0: i32, %arg1: i32) -> (i32, i32) {
    %c0_i32 = arith.constant 0 : i32
    %c0_i32_0 = arith.constant 0 : i32
    return %arg0, %c0_i32 : i32, i32
  }
  func.func @transform_1(%arg0: i32, %arg1: i32) -> (i32, i32) {
    %c0_i32 = arith.constant 0 : i32
    %c0_i32_0 = arith.constant 0 : i32
    return %arg1, %c0_i32 : i32, i32
  }
  func.func @transform_2(%arg0: i32, %arg1: i32) -> (i32, i32) {
    %c0_i32 = arith.constant 0 : i32
    %c0_i32_0 = arith.constant 0 : i32
    return %arg1, %c0_i32 : i32, i32
  }
  func.func @transform_3(%arg0: i32, %arg1: i32) -> (i32, i32) {
    %c0_i32 = arith.constant 0 : i32
    %c0_i32_0 = arith.constant 0 : i32
    return %arg0, %c0_i32 : i32, i32
  }
}

</mosaic_0001>

<llo_original>
// kernel: pruned_qwen2_mlp_forward.1
$region0: #{pruned_qwen2_mlp_forward.1}
  #allocation0 [shape = 'u32[]', space=smem, size = 0x4, offset = 0x4, fixed_abs, tag = 'smem constant byte address 0x4 - core index']
  #allocation1 [shape = 'u32[144,128]{1,0:T(1,128)}', space=vmem, size = 0x12000, scoped, tag = 'internal scratch']
  #allocation2 [shape = 'f32[16,32]{1,0:T(8,128)}', space=vmem, size = 0x2000, scoped, tag = 'scratch operand']
  %s0 = inlined_call_operand.vmem [shape: f32[16,32], index: 0, kind: input, shape index: {}]
  %s1 = inlined_call_operand.vmem [shape: f32[256,32], index: 1, kind: input, shape index: {}]
  %s2 = inlined_call_operand.vmem [shape: f32[128,32], index: 2, kind: input, shape index: {}]
  %s3 = inlined_call_operand.hbm [shape: f32[16,32], index: 3, kind: output, shape index: {}]
  %s4 = sld [smem:[#allocation0]]
  $region30: #{pruned_qwen2_mlp_forward.1} parent=0
    _
  %s6 = ssub.s32 1, %s4
  %s7 = scalar_select 0, %s6, %s4
  $region1: #{pruned_qwen2_mlp_forward.1} parent=0
    #allocation3 [shape = 'u8[8192]{0}', space=vmem, size = 0x2000, scoped, tag = 'output window, operand 0, single buffered']
    #allocation4 [shape = 's32[1]{0}', space=sflag, size = 0x4, scoped, tag = 'scoped memory for pruned_qwen2_mlp_forward.1']
    %8 = vsyncpa [#allocation4], 0
    // Predicated region
    $region2: #{pruned_qwen2_mlp_forward.1} parent=1 // pred_check
      _
    $region3: #{pruned_qwen2_mlp_forward.1} parent=1 // pred_check_branch
      %10 = sbr.rel (0) target = $region5
    $region4: #{pruned_qwen2_mlp_forward.1} parent=1 // pred_region
      _
    $region5: #{pruned_qwen2_mlp_forward.1} parent=1 // pred_fallthru
      _
    // Predicated region
    $region6: #{pruned_qwen2_mlp_forward.1} parent=1 // pred_check
      _
    $region7: #{pruned_qwen2_mlp_forward.1} parent=1 // pred_check_branch
      %12 = sbr.rel (0) target = $region9
    $region8: #{pruned_qwen2_mlp_forward.1} parent=1 // pred_region
      _
    $region9: #{pruned_qwen2_mlp_forward.1} parent=1 // pred_fallthru
      _
    // Predicated region
    $region10: #{pruned_qwen2_mlp_forward.1} parent=1 // pred_check
      _
    $region11: #{pruned_qwen2_mlp_forward.1} parent=1 // pred_check_branch
      %14 = sbr.rel (0) target = $region13
    $region12: #{pruned_qwen2_mlp_forward.1} parent=1 // pred_region
      _
    $region13: #{pruned_qwen2_mlp_forward.1} parent=1 // pred_fallthru
      _
    %p15 = scmp.eq.s32.totalorder 0, 0
    // Predicated region
    $region14: #{pruned_qwen2_mlp_forward.1} parent=1 // pred_check
      %p16 = pneg %p15
    $region15: #{pruned_qwen2_mlp_forward.1} parent=1 // pred_check_branch
      %18 = sbr.rel (%p16) target = $region17
    $region16: #{pruned_qwen2_mlp_forward.1} parent=1 // pred_region
      %vm19 = vcmask 261120
      %20 = vst.msk [vmem:[#allocation2] sm:$0xff] %vm19, 0.0
      %21 = vst.msk [vmem:[#allocation2 + $0x8] sm:$0xff] %vm19, 0.0
    $region17: #{pruned_qwen2_mlp_forward.1} parent=1 // pred_fallthru
      _
    %v22 = vld [vmem:[%s0] sm:$0xff]
    %v23 = vld [vmem:[%s0 + $0x8] sm:$0xff]
    %v24 = vld [vmem:[%s1] sm:$0xff]
    %v25 = vld [vmem:[%s1 + $0x8] sm:$0xff]
    %v26 = vld [vmem:[%s1 + $0x10] sm:$0xff]
    %v27 = vld [vmem:[%s1 + $0x18] sm:$0xff]
    %v28 = vld [vmem:[%s1 + $0x20] sm:$0xff]
    %v29 = vld [vmem:[%s1 + $0x28] sm:$0xff]
    %v30 = vld [vmem:[%s1 + $0x30] sm:$0xff]
    %v31 = vld [vmem:[%s1 + $0x38] sm:$0xff]
    %v32 = vld [vmem:[%s1 + $0x40] sm:$0xff]
    %v33 = vld [vmem:[%s1 + $0x48] sm:$0xff]
    %v34 = vld [vmem:[%s1 + $0x50] sm:$0xff]
    %v35 = vld [vmem:[%s1 + $0x58] sm:$0xff]
    %v36 = vld [vmem:[%s1 + $0x60] sm:$0xff]
    %v37 = vld [vmem:[%s1 + $0x68] sm:$0xff]
    %v38 = vld [vmem:[%s1 + $0x70] sm:$0xff]
    %v39 = vld [vmem:[%s1 + $0x78] sm:$0xff]
    %v40 = vld [vmem:[%s1 + $0x80] sm:$0xff]
    %v41 = vld [vmem:[%s1 + $0x88] sm:$0xff]
    %v42 = vld [vmem:[%s1 + $0x90] sm:$0xff]
    %v43 = vld [vmem:[%s1 + $0x98] sm:$0xff]
    %v44 = vld [vmem:[%s1 + $0xa0] sm:$0xff]
    %v45 = vld [vmem:[%s1 + $0xa8] sm:$0xff]
    %v46 = vld [vmem:[%s1 + $0xb0] sm:$0xff]
    %v47 = vld [vmem:[%s1 + $0xb8] sm:$0xff]
    %v48 = vld [vmem:[%s1 + $0xc0] sm:$0xff]
    %v49 = vld [vmem:[%s1 + $0xc8] sm:$0xff]
    %v50 = vld [vmem:[%s1 + $0xd0] sm:$0xff]
    %v51 = vld [vmem:[%s1 + $0xd8] sm:$0xff]
    %v52 = vld [vmem:[%s1 + $0xe0] sm:$0xff]
    %v53 = vld [vmem:[%s1 + $0xe8] sm:$0xff]
    %v54 = vld [vmem:[%s1 + $0xf0] sm:$0xff]
    %v55 = vld [vmem:[%s1 + $0xf8] sm:$0xff]
    %vm56 = vcmask 261120
    %v58 = vsel %vm56, %v22, 0
    %v61 = vsel %vm56, %v23, 0
    %v64 = vsel %vm56, %v24, 0
    %v67 = vsel %vm56, %v25, 0
    %v70 = vsel %vm56, %v26, 0
    %v73 = vsel %vm56, %v27, 0
    %v76 = vsel %vm56, %v28, 0
    %v79 = vsel %vm56, %v29, 0
    %v82 = vsel %vm56, %v30, 0
    %v85 = vsel %vm56, %v31, 0
    %v88 = vsel %vm56, %v32, 0
    %v91 = vsel %vm56, %v33, 0
    %v94 = vsel %vm56, %v34, 0
    %v97 = vsel %vm56, %v35, 0
    %v100 = vsel %vm56, %v36, 0
    %v103 = vsel %vm56, %v37, 0
    %v106 = vsel %vm56, %v38, 0
    %v109 = vsel %vm56, %v39, 0
    %v112 = vsel %vm56, %v40, 0
    %v115 = vsel %vm56, %v41, 0
    %v118 = vsel %vm56, %v42, 0
    %v121 = vsel %vm56, %v43, 0
    %v124 = vsel %vm56, %v44, 0
    %v127 = vsel %vm56, %v45, 0
    %v130 = vsel %vm56, %v46, 0
    %v133 = vsel %vm56, %v47, 0
    %v136 = vsel %vm56, %v48, 0
    %v139 = vsel %vm56, %v49, 0
    %v142 = vsel %vm56, %v50, 0
    %v145 = vsel %vm56, %v51, 0
    %v148 = vsel %vm56, %v52, 0
    %v151 = vsel %vm56, %v53, 0
    %v154 = vsel %vm56, %v54, 0
    %v157 = vsel %vm56, %v55, 0
    %159 = vmatprep.subr.mxu0 0.0
    %160 = vmatpush1.xpose.msra.mxu0 %v64
    %161 = vmatprep.subr.mxu0 0.0
    %162 = vmatpush1.xpose.msra.mxu0 %v67
    %163 = vmatprep.subr.mxu0 0.0
    %164 = vmatpush1.xpose.msra.mxu0 %v70
    %165 = vmatprep.subr.mxu0 0.0
    %166 = vmatpush1.xpose.msra.mxu0 %v73
    %167 = vmatprep.subr.mxu0 0.0
    %168 = vmatpush1.xpose.msra.mxu0 %v76
    %169 = vmatprep.subr.mxu0 0.0
    %170 = vmatpush1.xpose.msra.mxu0 %v79
    %171 = vmatprep.subr.mxu0 0.0
    %172 = vmatpush1.xpose.msra.mxu0 %v82
    %173 = vmatprep.subr.mxu0 0.0
    %174 = vmatpush1.xpose.msra.mxu0 %v85
    %175 = vmatprep.subr.mxu0 0.0
    %176 = vmatpush1.xpose.msra.mxu0 %v88
    %177 = vmatprep.subr.mxu0 0.0
    %178 = vmatpush1.xpose.msra.mxu0 %v91
    %179 = vmatprep.subr.mxu0 0.0
    %180 = vmatpush1.xpose.msra.mxu0 %v94
    %181 = vmatprep.subr.mxu0 0.0
    %182 = vmatpush1.xpose.msra.mxu0 %v97
    %183 = vmatprep.subr.mxu0 0.0
    %184 = vmatpush1.xpose.msra.mxu0 %v100
    %185 = vmatprep.subr.mxu0 0.0
    %186 = vmatpush1.xpose.msra.mxu0 %v103
    %187 = vmatprep.subr.mxu0 0.0
    %188 = vmatpush1.xpose.msra.mxu0 %v106
    %189 = vmatprep.subr.mxu0 0.0
    %190 = vmatpush1.xpose.msra.mxu0 %v109
    %191 = vmatprep.subr.mxu0 0.0
    %192 = vmatpush1.xpose.msra.mxu0 %v112
    %193 = vmatprep.subr.mxu0 0.0
    %194 = vmatpush1.xpose.msra.mxu0 %v115
    %195 = vmatprep.subr.mxu0 0.0
    %196 = vmatpush1.xpose.msra.mxu0 %v118
    %197 = vmatprep.subr.mxu0 0.0
    %198 = vmatpush1.xpose.msra.mxu0 %v121
    %199 = vmatprep.subr.mxu0 0.0
    %200 = vmatpush1.xpose.msra.mxu0 %v124
    %201 = vmatprep.subr.mxu0 0.0
    %202 = vmatpush1.xpose.msra.mxu0 %v127
    %203 = vmatprep.subr.mxu0 0.0
    %204 = vmatpush1.xpose.msra.mxu0 %v130
    %205 = vmatprep.subr.mxu0 0.0
    %206 = vmatpush1.xpose.msra.mxu0 %v133
    %207 = vmatprep.subr.mxu0 0.0
    %208 = vmatpush1.xpose.msra.mxu0 %v136
    %209 = vmatprep.subr.mxu0 0.0
    %210 = vmatpush1.xpose.msra.mxu0 %v139
    %211 = vmatprep.subr.mxu0 0.0
    %212 = vmatpush1.xpose.msra.mxu0 %v142
    %213 = vmatprep.subr.mxu0 0.0
    %214 = vmatpush1.xpose.msra.mxu0 %v145
    %215 = vmatprep.subr.mxu0 0.0
    %216 = vmatpush1.xpose.msra.mxu0 %v148
    %217 = vmatprep.subr.mxu0 0.0
    %218 = vmatpush1.xpose.msra.mxu0 %v151
    %219 = vmatprep.subr.mxu0 0.0
    %220 = vmatpush1.xpose.msra.mxu0 %v154
    %221 = vmatprep.subr.mxu0 0.0
    %222 = vmatpush1.xpose.msra.mxu0 %v157
    %223 = vmatprep.mubr.f32.mxu0 0.0
    %224 = vmatmul.mubr.f32.gmra.mrb[0].mxu0 %v58
    %v225 = vpop.f32.mrb[0].mxu0
    %v226 = vadd.f32 0.0, %v225
    %v227 = vpop.f32.mrb[0].mxu0
    %v228 = vadd.f32 0.0, %v227
    %229 = vmatprep.mubr.f32.mxu0 0.0
    %230 = vmatmul.mubr.f32.gmra.mrb[0].mxu0 %v61
    %v231 = vpop.f32.mrb[0].mxu0
    %v232 = vadd.f32 0.0, %v231
    %v233 = vpop.f32.mrb[0].mxu0
    %v234 = vadd.f32 0.0, %v233
    %235 = vdwg.mxu0
    %v236 = vxor.u32 %v226, 2147483648
    %v237 = vxor.u32 %v232, 2147483648
    %v238 = vmul.f32 %v236, 1.442695
    %v239 = vpow.pop %v238
    %v240 = vmul.f32 %v237, 1.442695
    %v241 = vpow.pop %v240
    %v242 = vadd.f32 %v239, 1.0
    %v243 = vadd.f32 %v241, 1.0
    %v244 = vrcp.pop %v242
    %v245 = vmul.f32 1.0, %v244
    %v246 = vrcp.pop %v243
    %v247 = vmul.f32 1.0, %v246
    %v248 = vmul.f32 %v226, %v245
    %v249 = vmul.f32 %v232, %v247
    %v250 = vmul.f32 %v248, %v228
    %v251 = vmul.f32 %v249, %v234
    %v252 = vld [vmem:[#allocation2] sm:$0xff]
    %v253 = vld [vmem:[#allocation2 + $0x8] sm:$0xff]
    %v254 = vld [vmem:[%s2] sm:$0xff]
    %v255 = vld [vmem:[%s2 + $0x8] sm:$0xff]
    %v256 = vld [vmem:[%s2 + $0x10] sm:$0xff]
    %v257 = vld [vmem:[%s2 + $0x18] sm:$0xff]
    %v258 = vld [vmem:[%s2 + $0x20] sm:$0xff]
    %v259 = vld [vmem:[%s2 + $0x28] sm:$0xff]
    %v260 = vld [vmem:[%s2 + $0x30] sm:$0xff]
    %v261 = vld [vmem:[%s2 + $0x38] sm:$0xff]
    %v262 = vld [vmem:[%s2 + $0x40] sm:$0xff]
    %v263 = vld [vmem:[%s2 + $0x48] sm:$0xff]
    %v264 = vld [vmem:[%s2 + $0x50] sm:$0xff]
    %v265 = vld [vmem:[%s2 + $0x58] sm:$0xff]
    %v266 = vld [vmem:[%s2 + $0x60] sm:$0xff]
    %v267 = vld [vmem:[%s2 + $0x68] sm:$0xff]
    %v268 = vld [vmem:[%s2 + $0x70] sm:$0xff]
    %v269 = vld [vmem:[%s2 + $0x78] sm:$0xff]
    %270 = vmatprep.subr.mxu0 0.0
    %271 = vmatpush1.msra.mxu0 %v254
    %272 = vmatprep.subr.mxu0 0.0
    %273 = vmatpush1.msra.mxu0 %v255
    %274 = vmatprep.subr.mxu0 0.0
    %275 = vmatpush1.msra.mxu0 %v256
    %276 = vmatprep.subr.mxu0 0.0
    %277 = vmatpush1.msra.mxu0 %v257
    %278 = vmatprep.subr.mxu0 0.0
    %279 = vmatpush1.msra.mxu0 %v258
    %280 = vmatprep.subr.mxu0 0.0
    %281 = vmatpush1.msra.mxu0 %v259
    %282 = vmatprep.subr.mxu0 0.0
    %283 = vmatpush1.msra.mxu0 %v260
    %284 = vmatprep.subr.mxu0 0.0
    %285 = vmatpush1.msra.mxu0 %v261
    %286 = vmatprep.subr.mxu0 0.0
    %287 = vmatpush1.msra.mxu0 %v262
    %288 = vmatprep.subr.mxu0 0.0
    %289 = vmatpush1.msra.mxu0 %v263
    %290 = vmatprep.subr.mxu0 0.0
    %291 = vmatpush1.msra.mxu0 %v264
    %292 = vmatprep.subr.mxu0 0.0
    %293 = vmatpush1.msra.mxu0 %v265
    %294 = vmatprep.subr.mxu0 0.0
    %295 = vmatpush1.msra.mxu0 %v266
    %296 = vmatprep.subr.mxu0 0.0
    %297 = vmatpush1.msra.mxu0 %v267
    %298 = vmatprep.subr.mxu0 0.0
    %299 = vmatpush1.msra.mxu0 %v268
    %300 = vmatprep.subr.mxu0 0.0
    %301 = vmatpush1.msra.mxu0 %v269
    %302 = vmatprep.subr.mxu0 0.0
    %303 = vmatpush1.msra.mxu0 0.0
    %304 = vmatprep.subr.mxu0 0.0
    %305 = vmatpush1.msra.mxu0 0.0
    %306 = vmatprep.subr.mxu0 0.0
    %307 = vmatpush1.msra.mxu0 0.0
    %308 = vmatprep.subr.mxu0 0.0
    %309 = vmatpush1.msra.mxu0 0.0
    %310 = vmatprep.subr.mxu0 0.0
    %311 = vmatpush1.msra.mxu0 0.0
    %312 = vmatprep.subr.mxu0 0.0
    %313 = vmatpush1.msra.mxu0 0.0
    %314 = vmatprep.subr.mxu0 0.0
    %315 = vmatpush1.msra.mxu0 0.0
    %316 = vmatprep.subr.mxu0 0.0
    %317 = vmatpush1.msra.mxu0 0.0
    %318 = vmatprep.subr.mxu0 0.0
    %319 = vmatpush1.msra.mxu0 0.0
    %320 = vmatprep.subr.mxu0 0.0
    %321 = vmatpush1.msra.mxu0 0.0
    %322 = vmatprep.subr.mxu0 0.0
    %323 = vmatpush1.msra.mxu0 0.0
    %324 = vmatprep.subr.mxu0 0.0
    %325 = vmatpush1.msra.mxu0 0.0
    %326 = vmatprep.subr.mxu0 0.0
    %327 = vmatpush1.msra.mxu0 0.0
    %328 = vmatprep.subr.mxu0 0.0
    %329 = vmatpush1.msra.mxu0 0.0
    %330 = vmatprep.subr.mxu0 0.0
    %331 = vmatpush1.msra.mxu0 0.0
    %332 = vmatprep.subr.mxu0 0.0
    %333 = vmatpush1.msra.mxu0 0.0
    %334 = vmatprep.mubr.f32.mxu0 0.0
    %335 = vmatmul.mubr.f32.gmra.mrb[0].mxu0 %v250
    %v336 = vpop.f32.mrb[0].mxu0
    %v337 = vadd.f32 0.0, %v336
    %v338 = vpop.f32.mrb[0].mxu0
    %339 = vmatprep.mubr.f32.mxu0 0.0
    %340 = vmatmul.mubr.f32.gmra.mrb[0].mxu0 %v251
    %v341 = vpop.f32.mrb[0].mxu0
    %v342 = vadd.f32 0.0, %v341
    %v343 = vpop.f32.mrb[0].mxu0
    %344 = vdwg.mxu0
    %v345 = vadd.f32 %v252, %v337
    %v346 = vadd.f32 %v253, %v342
    %347 = vst.msk [vmem:[#allocation2] sm:$0xff] %vm56, %v345
    %348 = vst.msk [vmem:[#allocation2 + $0x8] sm:$0xff] %vm56, %v346
    // Predicated region
    $region18: #{pruned_qwen2_mlp_forward.1} parent=1 // pred_check
      %p349 = pneg %p15
    $region19: #{pruned_qwen2_mlp_forward.1} parent=1 // pred_check_branch
      %351 = sbr.rel (%p349) target = $region21
    $region20: #{pruned_qwen2_mlp_forward.1} parent=1 // pred_region
      %v352 = vld [vmem:[#allocation2] sm:$0xff]
      %v353 = vld [vmem:[#allocation2 + $0x8] sm:$0xff]
      %354 = vst.msk [vmem:[#allocation3] sm:$0xff] %vm56, %v352
      %355 = vst.msk [vmem:[#allocation3 + $0x8] sm:$0xff] %vm56, %v353
    $region21: #{pruned_qwen2_mlp_forward.1} parent=1 // pred_fallthru
      _
    // Predicated region
    $region22: #{pruned_qwen2_mlp_forward.1} parent=1 // pred_check
      _
    $region23: #{pruned_qwen2_mlp_forward.1} parent=1 // pred_check_branch
      %357 = sbr.rel (0) target = $region25
    $region24: #{pruned_qwen2_mlp_forward.1} parent=1 // pred_region
      %s359 = ssub.s32 256, 256
      %360 = vsyncadd [#allocation4], %s359
      %s361 = sshll.u32 [#allocation3], 4
      %s362 = int_to_ptr.vmem [resolvable:$true] %s361
      %367 = dma.vmem_to_hbm [thread:$0]  %s362, 256, %s3, [#allocation4], 128, 128, 8
    $region25: #{pruned_qwen2_mlp_forward.1} parent=1 // pred_fallthru
      _
    // Predicated region
    $region26: #{pruned_qwen2_mlp_forward.1} parent=1 // pred_check
      _
    $region27: #{pruned_qwen2_mlp_forward.1} parent=1 // pred_check_branch
      %369 = sbr.rel (0) target = $region29
    $region28: #{pruned_qwen2_mlp_forward.1} parent=1 // pred_region
      %370 = dma.done [#allocation4], 256
    $region29: #{pruned_qwen2_mlp_forward.1} parent=1 // pred_fallthru
      _
    %371 = vsyncpa [#allocation4], 1

</llo_original>
